<compile_context>
chip_gen: v7x
topology: tpu7x:2x2x1
jax: 0.10.0
libtpu: 0.0.40
codegen_flags: <defaults>
</compile_context>

<pallas_src>
import jax
import jax.numpy as jnp
from jax.experimental import pallas as pl
from jax.experimental.pallas import tpu as pltpu

# ----------------------------- small config ---------------------------------
B = 2             # batch
C_IN = 3          # image channels
IMG = 64          # image spatial size (stand-in for 448)
PATCH = 8         # conv kernel == stride (patchify conv)
HF = IMG // PATCH             # feature spatial size (stand-in for 14)
C_FEAT = 128                  # feature channels, multiple of 128 (stand-in for 2048)
K_FC = C_FEAT * HF * HF       # flattened feature dim (stand-in for 14*14*2048)
OUT_SIZE = 256                # output_size (stand-in for 2048)

# FC tiling (real-scale targets; clamped to the toy problem automatically).
FC_TK = 8192                  # K (reduction) tile of the streamed weight
FC_TN = 512                   # N tile; int8 8192x512 = 4 MiB -> DMA time >> step overhead
FC_W_BUFFERS = 3              # deeper weight pipeline: tiny M means no compute hides DMA

# Conv (stand-in CNN) tiling.
CONV_TM = 64                  # patch-row tile (multiple of 8)
CONV_TN = 512                 # output-channel tile (multiple of 128)

# Capability probe for deeper multi-buffering (kept silent; flag is inspectable).
try:
    pl.BlockSpec((8, 128), lambda i: (0, 0), pipeline_mode=pl.Buffered(2))
    _HAS_BUFFERED = True
except Exception:             # pragma: no cover - older APIs
    _HAS_BUFFERED = False


def _round_up(x, m):
    return ((x + m - 1) // m) * m


def _pad2d(x, rows, cols):
    r, c = x.shape
    if r == rows and c == cols:
        return x
    return jnp.pad(x, ((0, rows - r), (0, cols - c)))


def _stream_spec(block_shape, index_map, buffers):
    """BlockSpec for a streamed operand, with deeper multi-buffering when supported."""
    if buffers > 2 and _HAS_BUFFERED:
        return pl.BlockSpec(block_shape, index_map, pipeline_mode=pl.Buffered(buffers))
    return pl.BlockSpec(block_shape, index_map)


# ------------------------- Pallas kernel bodies -----------------------------
def _conv_mm_relu_kernel(p_ref, w_ref, b_ref, o_ref):
    # One (tm, tn) tile: patches[tm, K] @ W[K, tn] + b, ReLU. K = Cin*kh*kw is small,
    # so the reduction stays in one block; bf16 inputs, f32 accumulate on the MXU.
    acc = jnp.dot(p_ref[...], w_ref[...], preferred_element_type=jnp.float32)
    o_ref[...] = jnp.maximum(acc + b_ref[...], 0.0).astype(o_ref.dtype)


def _fc_tanh_int8_kernel(x_ref, w_ref, s_ref, b_ref, o_ref, acc_ref):
    # Weight-streaming GEMV: x streams as (m_pad, tk) blocks along the 'arbitrary' K axis
    # together with the int8 weight tiles.  The int8 tile is a storage/DMA format only:
    # it is cast to bf16 (integers <=127 are exact in bf16) and fed to a bf16xbf16 MXU
    # matmul (portable to v7x).  The per-output-channel dequant scale and the bias are
    # applied to the f32 accumulator on the final K step, fused with tanh.
    kk = pl.program_id(1)

    @pl.when(kk == 0)
    def _():
        acc_ref[...] = jnp.zeros_like(acc_ref)

    w_bf16 = w_ref[...].astype(jnp.bfloat16)
    acc_ref[...] += jnp.dot(x_ref[...], w_bf16, preferred_element_type=jnp.float32)

    @pl.when(kk == pl.num_programs(1) - 1)
    def _():
        o_ref[...] = jnp.tanh(acc_ref[...] * s_ref[...] + b_ref[...]).astype(o_ref.dtype)


# ------------------------------ wrappers -------------------------------------
def _conv_features_mm(image_nchw, w_conv, b_conv, out_dtype):
    """Frozen patchify-conv + ReLU. Returns [B*Hf*Wf, C_FEAT] rows in NHWC order."""
    b, c, h, w = image_nchw.shape
    hf, wf = h // PATCH, w // PATCH
    # im2col glue (pure reshape/transpose): NCHW -> [B*Hf*Wf, Cin*kh*kw]
    patches = (image_nchw
               .reshape(b, c, hf, PATCH, wf, PATCH)
               .transpose(0, 2, 4, 1, 3, 5)
               .reshape(b * hf * wf, c * PATCH * PATCH))

    m, k = patches.shape
    n = w_conv.shape[1]

    k_pad = _round_up(k, 128)            # lane-dense im2col K (192 -> 256)
    tm = min(CONV_TM, _round_up(m, 8))
    tn = min(CONV_TN, _round_up(n, 128))
    m_pad = _round_up(max(m, 8), tm)
    n_pad = _round_up(n, tn)

    patches_p = _pad2d(patches, m_pad, k_pad).astype(jnp.bfloat16)
    w_p = _pad2d(w_conv, k_pad, n_pad)   # frozen weights, already bf16
    b_p = _pad2d(b_conv, 1, n_pad)       # f32 bias

    grid = (m_pad // tm, n_pad // tn)    # both axes independent -> "parallel"
    out = pl.pallas_call(
        _conv_mm_relu_kernel,
        out_shape=jax.ShapeDtypeStruct((m_pad, n_pad), out_dtype),
        grid=grid,
        in_specs=[
            pl.BlockSpec((tm, k_pad), lambda i, j: (i, 0)),
            pl.BlockSpec((k_pad, tn), lambda i, j: (0, j)),
            pl.BlockSpec((1, tn), lambda i, j: (0, j)),
        ],
        out_specs=pl.BlockSpec((tm, tn), lambda i, j: (i, j)),
        compiler_params=pltpu.CompilerParams(
            dimension_semantics=("parallel", "parallel")),
    )(patches_p, w_p, b_p)

    return out[:m, :n]


def _fc_tanh_int8(flat_feats, w_q, w_scale, b_fc):
    """tanh((flat @ dequant(w_q)) + b) as a weight-streaming tiled Pallas matmul."""
    if flat_feats.dtype != jnp.bfloat16:
        flat_feats = flat_feats.astype(jnp.bfloat16)
    m, k = flat_feats.shape
    n = w_q.shape[1]

    tk = min(FC_TK, _round_up(k, 128))
    tn = min(FC_TN, _round_up(n, 128))
    # Ensure >=2 tiles on the leading/parallel N axis when the problem allows, so both
    # v7x TensorCores get a disjoint half of the weight stream.
    if _round_up(n, 128) >= 256 and _round_up(n, tn) // tn < 2:
        tn = _round_up(_round_up(n, 128) // 2, 128)

    m_pad = max(8, _round_up(m, 8))      # tiny batch -> one sublane; fine while HBM-bound
    k_pad = _round_up(k, tk)
    n_pad = _round_up(n, tn)

    x_p = _pad2d(flat_feats, m_pad, k_pad)          # bf16 activations
    w_p = _pad2d(w_q, k_pad, n_pad)                 # int8 weight (frozen, pre-permuted)
    s_p = _pad2d(w_scale, 1, n_pad)                 # f32 per-output-channel dequant scale
    b_p = _pad2d(b_fc, 1, n_pad)                    # f32 bias

    grid = (n_pad // tn, k_pad // tk)               # N parallel, reduction axis last
    n_tiles = grid[0]

    # Explicit VMEM budget: weight buffers + streamed x buffers + acc + out + scale/bias,
    # plus headroom.  Keeps v5e under control and leaves tile-growth room on v6e/v7x.
    vmem_budget = int(FC_W_BUFFERS * tk * tn            # int8 weight tiles
                      + 2 * m_pad * tk * 2              # bf16 x tiles (double-buffered)
                      + 3 * m_pad * tn * 4              # acc scratch + out double buffer
                      + 4 * tn * 4 * 2                  # scale + bias buffers
                      + (4 << 20))
    vmem_budget = min(vmem_budget, 48 << 20)

    cost = pl.CostEstimate(
        flops=int(2 * m_pad * n_pad * k_pad),
        transcendentals=int(m_pad * n_pad),             # tanh
        bytes_accessed=int(n_tiles * x_p.size * 2       # x re-streamed once per N tile
                           + w_p.size                   # int8 weight stream
                           + (s_p.size + b_p.size) * 4
                           + m_pad * n_pad * 4),
    )

    out = pl.pallas_call(
        _fc_tanh_int8_kernel,
        out_shape=jax.ShapeDtypeStruct((m_pad, n_pad), jnp.float32),
        grid=grid,
        in_specs=[
            # Activations stream along K (no resident double-buffered full-K block).
            pl.BlockSpec((m_pad, tk), lambda j, kk: (0, kk)),
            # Streamed int8 weight tiles: the HBM-bound operand (deeper multi-buffering).
            _stream_spec((tk, tn), lambda j, kk: (kk, j), FC_W_BUFFERS),
            pl.BlockSpec((1, tn), lambda j, kk: (0, j)),
            pl.BlockSpec((1, tn), lambda j, kk: (0, j)),
        ],
        out_specs=pl.BlockSpec((m_pad, tn), lambda j, kk: (0, j)),
        scratch_shapes=[pltpu.VMEM((m_pad, tn), jnp.float32)],
        compiler_params=pltpu.CompilerParams(
            dimension_semantics=("parallel", "arbitrary"),
            vmem_limit_bytes=vmem_budget),
        cost_estimate=cost,
    )(x_p, w_p, s_p, b_p)

    return out[:m, :n]


def image_encoder_forward(image_nchw, params, att=False):
    """Mirrors ImageEncoder.forward (AbstractAtt uses att=True; default mirrors att=False)."""
    b = image_nchw.shape[0]
    hf, wf = image_nchw.shape[2] // PATCH, image_nchw.shape[3] // PATCH
    if att:
        feat = _conv_features_mm(image_nchw, params["w_conv"], params["b_conv"],
                                 jnp.float32)
        # NCHW feature map [B, Cfeat, Hf, Wf], as PyTorch returns for att=True.
        return feat.reshape(b, hf, wf, -1).transpose(0, 3, 1, 2)
    # att=False: keep the NHWC flatten order (no transpose).  w_fc rows were pre-permuted
    # offline (frozen weights) to match, so the result equals PyTorch's NCHW view + Linear.
    feat = _conv_features_mm(image_nchw, params["w_conv"], params["b_conv"],
                             jnp.bfloat16)
    flat = feat.reshape(b, -1)
    return _fc_tanh_int8(flat, params["w_fc_q"], params["w_fc_scale"], params["b_fc"])


def init_params(key):
    k1, k2, k3, k4 = jax.random.split(key, 4)
    # Frozen conv "stem": weight laid out [Cin*kh*kw, Cfeat] (pre-transposed for matmul),
    # stored bf16; bias [1, Cfeat] f32.
    w_conv = (jax.random.normal(k1, (C_IN * PATCH * PATCH, C_FEAT), jnp.float32)
              * 0.05).astype(jnp.bfloat16)
    b_conv = jax.random.normal(k2, (1, C_FEAT), jnp.float32) * 0.01
    # fc: PyTorch Linear weight is [out, in]; master f32 copy stored transposed [in, out]
    # with rows in the NCHW flatten order.  The deployable copy is built in prepare_params.
    w_fc = jax.random.normal(k3, (K_FC, OUT_SIZE), jnp.float32) * 0.02
    b_fc = jax.random.normal(k4, (1, OUT_SIZE), jnp.float32) * 0.01
    return {"w_conv": w_conv, "b_conv": b_conv, "w_fc": w_fc, "b_fc": b_fc}


def prepare_params(params):
    """One-time offline prep of the frozen FC weight:
       1) permute rows NCHW -> NHWC so the att=False path needs no feature transpose;
       2) per-output-channel int8 quantization (storage/DMA format only; the dequant
          scale is applied to the f32 accumulator inside the kernel)."""
    w = params["w_fc"]
    w_nhwc = (w.reshape(C_FEAT, HF, HF, OUT_SIZE)
                .transpose(1, 2, 0, 3)
                .reshape(K_FC, OUT_SIZE))
    scale = jnp.maximum(jnp.max(jnp.abs(w_nhwc), axis=0, keepdims=True) / 127.0, 1e-8)
    w_q = jnp.clip(jnp.round(w_nhwc / scale), -127, 127).astype(jnp.int8)
    out = dict(params)
    out["w_fc_q"] = w_q
    out["w_fc_scale"] = scale.astype(jnp.float32)
    return out


def reference_forward(image_nchw, params, att=False):
    """Pure-JAX f32 reference of the PyTorch path (NCHW flatten, unquantized FC weight)."""
    b, c, h, w = image_nchw.shape
    hf, wf = h // PATCH, w // PATCH
    patches = (image_nchw
               .reshape(b, c, hf, PATCH, wf, PATCH)
               .transpose(0, 2, 4, 1, 3, 5)
               .reshape(b * hf * wf, c * PATCH * PATCH)).astype(jnp.float32)
    feat = jnp.maximum(patches @ params["w_conv"].astype(jnp.float32) + params["b_conv"],
                       0.0)
    feat_nchw = feat.reshape(b, hf, wf, C_FEAT).transpose(0, 3, 1, 2)
    if att:
        return feat_nchw
    flat = feat_nchw.reshape(b, -1)                 # PyTorch .view(B, -1) on NCHW
    return jnp.tanh(flat @ params["w_fc"] + params["b_fc"])


if __name__ == "__main__":
    key = jax.random.PRNGKey(0)
    pkey, xkey = jax.random.split(key)
    params = init_params(pkey)
    prepared = prepare_params(params)
    image = jax.random.normal(xkey, (B, C_IN, IMG, IMG), jnp.float32)

    # att=False branch: [B, OUT_SIZE] embedding, values in [-1, 1].
    emb = jax.block_until_ready(image_encoder_forward(image, prepared, att=False))
    assert emb.shape == (B, OUT_SIZE)
    assert bool(jnp.all(jnp.isfinite(emb)))
    assert bool(jnp.all(jnp.abs(emb) <= 1.0))

    # att=True branch (what AbstractAtt consumes): raw NCHW feature map (ReLU output).
    feats = jax.block_until_ready(image_encoder_forward(image, prepared, att=True))
    assert feats.shape == (B, C_FEAT, HF, HF)
    assert bool(jnp.all(feats >= 0.0))

    # Validate against the f32 reference with a tolerance covering bf16 activations and
    # int8 weight storage (the permutation/quantization path is exercised end-to-end).
    ref_emb = reference_forward(image, params, att=False)
    ref_feat = reference_forward(image, params, att=True)
    assert float(jnp.max(jnp.abs(emb - ref_emb))) < 0.1
    assert float(jnp.max(jnp.abs(feats - ref_feat))) < 0.1

    print("KERNEL_OK")
</pallas_src>

<mosaic_0001>
module attributes {stable_mosaic.version = 11 : i64} {
  func.func @_conv_mm_relu_kernel(%arg0: i32, %arg1: i32, %arg2: memref<64x256xbf16, #tpu.memory_space<vmem>>, %arg3: memref<256x128xbf16, #tpu.memory_space<vmem>>, %arg4: memref<1x128xf32, #tpu.memory_space<vmem>>, %arg5: memref<64x128xbf16, #tpu.memory_space<vmem>>) attributes {dimension_semantics = [#tpu.dimension_semantics<parallel>, #tpu.dimension_semantics<parallel>], iteration_bounds = array<i64: 2, 1>, scalar_prefetch = 0 : i64, scratch_operands = 0 : i64, tpu.core_type = #tpu.core_type<tc>, window_params = [{transform_indices = @transform_0, window_bounds = array<i64: 64, 256>}, {transform_indices = @transform_1, window_bounds = array<i64: 256, 128>}, {transform_indices = @transform_2, window_bounds = array<i64: 1, 128>}, {transform_indices = @transform_3, window_bounds = array<i64: 64, 128>}]} {
    %c0 = arith.constant 0 : index
    %c0_0 = arith.constant 0 : index
    %0 = vector.load %arg2[%c0, %c0_0] : memref<64x256xbf16, #tpu.memory_space<vmem>>, vector<64x256xbf16>
    %c0_1 = arith.constant 0 : index
    %c0_2 = arith.constant 0 : index
    %1 = vector.load %arg3[%c0_1, %c0_2] : memref<256x128xbf16, #tpu.memory_space<vmem>>, vector<256x128xbf16>
    %cst = arith.constant dense<0.000000e+00> : vector<64x128xf32>
    %2 = tpu.matmul %0, %1, %cst {dimension_numbers = #tpu.dot_dimension_numbers<[1], [0], [0], [1], [0, 0, 1, 1], [], []>} : vector<64x256xbf16>, vector<256x128xbf16>, vector<64x128xf32> -> vector<64x128xf32>
    %c0_3 = arith.constant 0 : index
    %c0_4 = arith.constant 0 : index
    %3 = vector.load %arg4[%c0_3, %c0_4] : memref<1x128xf32, #tpu.memory_space<vmem>>, vector<1x128xf32>
    %4 = vector.broadcast %3 : vector<1x128xf32> to vector<64x128xf32>
    %5 = arith.addf %2, %4 : vector<64x128xf32>
    %cst_5 = arith.constant 0.000000e+00 : f32
    %6 = vector.broadcast %cst_5 : f32 to vector<64x128xf32>
    %7 = arith.maximumf %5, %6 : vector<64x128xf32>
    %8 = arith.truncf %7 : vector<64x128xf32> to vector<64x128xbf16>
    %c0_6 = arith.constant 0 : index
    %c0_7 = arith.constant 0 : index
    %9 = vector.load %arg5[%c0_6, %c0_7] : memref<64x128xbf16, #tpu.memory_space<vmem>>, vector<64x128xbf16>
    tpu.vector_store %arg5[%c0_6, %c0_7], %8 {strides = array<i32>} : memref<64x128xbf16, #tpu.memory_space<vmem>>, vector<64x128xbf16>,
    return
  }
  func.func @transform_0(%arg0: i32, %arg1: i32) -> (i32, i32) {
    %c0_i32 = arith.constant 0 : i32
    %c0_i32_0 = arith.constant 0 : i32
    return %arg0, %c0_i32 : i32, i32
  }
  func.func @transform_1(%arg0: i32, %arg1: i32) -> (i32, i32) {
    %c0_i32 = arith.constant 0 : i32
    %c0_i32_0 = arith.constant 0 : i32
    return %c0_i32, %arg1 : i32, i32
  }
  func.func @transform_2(%arg0: i32, %arg1: i32) -> (i32, i32) {
    %c0_i32 = arith.constant 0 : i32
    %c0_i32_0 = arith.constant 0 : i32
    return %c0_i32, %arg1 : i32, i32
  }
  func.func @transform_3(%arg0: i32, %arg1: i32) -> (i32, i32) {
    %c0_i32 = arith.constant 0 : i32
    return %arg0, %arg1 : i32, i32
  }
}

</mosaic_0001>

<llo_original>
// kernel: tpu_custom_call.1
$region0: #{tpu_custom_call.1}
  #allocation0 [shape = 'u32[]', space=smem, size = 0x4, offset = 0x4, fixed_abs, tag = 'smem constant byte address 0x4 - core index']
  #allocation1 [shape = 'u32[144,128]{1,0:T(1,128)}', space=vmem, size = 0x12000, scoped, tag = 'internal scratch']
  %s0 = inlined_call_operand.hbm [shape: bf16[128,256], index: 0, kind: input, shape index: {}]
  %s1 = inlined_call_operand.hbm [shape: bf16[256,128], index: 1, kind: input, shape index: {}]
  %s2 = inlined_call_operand.vmem [shape: f32[1,128], index: 2, kind: input, shape index: {}]
  %s3 = inlined_call_operand.hbm [shape: bf16[128,128], index: 3, kind: output, shape index: {}]
  %s4 = sld [smem:[#allocation0]]
  $region53: #{tpu_custom_call.1} parent=0
    _
  %s6 = ssub.s32 1, %s4
  %s7 = scalar_select 0, %s6, %s4
  $region1: #{tpu_custom_call.1} parent=0
    #allocation2 [shape = 'u8[65536]{0}', space=vmem, size = 0x10000, scoped, tag = 'input window, operand 0']
    #allocation3 [shape = 's32[2]{0}', space=sflag, size = 0x8, scoped, tag = 'scoped memory for tpu_custom_call.1']
    #allocation4 [shape = 's32[2]{0}', space=sflag, size = 0x8, scoped, tag = 'scoped memory for tpu_custom_call.1']
    #allocation5 [shape = 'u8[65536]{0}', space=vmem, size = 0x10000, scoped, tag = 'input window, operand 1, single buffered']
    #allocation6 [shape = 's32[1]{0}', space=sflag, size = 0x4, scoped, tag = 'scoped memory for tpu_custom_call.1']
    #allocation7 [shape = 'u8[32768]{0}', space=vmem, size = 0x8000, scoped, tag = 'output window, operand 0']
    %8 = vsyncpa [#allocation3], 0
    %s9 = scalar_lea.sflag [#allocation3], 1
    %10 = vsyncpa %s9, 0
    %11 = vsyncpa [#allocation6], 0
    %12 = vsyncpa [#allocation4], 0
    %s13 = scalar_lea.sflag [#allocation4], 1
    %14 = vsyncpa %s13, 0
    loop: start=0, step=1, limit=4
    $region2: #{tpu_custom_call.1} parent=1 // loop_pre_header
      _
    $region3: #{tpu_custom_call.1} parent=1 // loop_header
      %s16 = sphi 0, %s20
      %p17 = scmp.ge.s32.totalorder %s16, 4
      %s23 = sphi 0, %s35
      %s24 = sphi 0, %s31
      %s25 = sphi 0, %s23
      %s26 = sphi 0, %s24
      %s27 = sphi 0, %s25
      %s28 = sphi 0, %s26
      %s38 = sphi 0, %s40
      %s41 = sphi 0, %s38
      %s42 = sphi 0, %s41
      %s58 = sphi 0, %s42
      %s64 = sphi 0, %s66
      %s67 = sphi 0, %s64
      %s68 = sphi 0, %s67
      %s84 = sphi 0, %s68
      %s90 = sphi 0, %s92
      %s93 = sphi 0, %s90
      %s94 = sphi 0, %s93
      %s110 = sphi 0, %s94
      %s118 = sphi 0, %s120
      %s121 = sphi 0, %s118
      %s122 = sphi 0, %s121
      %s138 = sphi 0, %s122
    $region4: #{tpu_custom_call.1} parent=1 // loop_header_branch
      %19 = sbr.rel (%p17) target = $region8
    $region5: #{tpu_custom_call.1} parent=1 // loop_body
      %s21 = ssub.s32 %s16, 1
      %s22 = ssub.s32 %s16, 2
      %s29 = sadd.s32 1, %s24
      %p30 = scmp.ge.s32.totalorder %s29, 1
      %s31 = scalar_select %p30, 0, %s29
      %s32 = sadd.s32 1, %s23
      %s33 = scalar_select %p30, %s32, %s23
      %p34 = scmp.ge.s32.totalorder %s33, 2
      %s35 = scalar_select %p34, 0, %s33
      %s36 = ssub.s32 %s23, %s35
      %p37 = scmp.eq.s32.totalorder %s36, 0
      %s39 = sadd.s32 %s38, 1
      %s40 = scalar_select %p37, %s38, %s39
      %p43 = pneg %p37
      %p44 = scmp.eq.s32.totalorder %s16, 1
      %p45 = por %p43, %p44
      %p46 = scmp.ne.s32.totalorder %s38, %s41
      %p47 = scmp.eq.s32.totalorder %s16, 0
      %p48 = por %p46, %p47
      %p49 = scmp.ne.s32.totalorder %s38, %s41
      %p50 = scmp.eq.s32.totalorder %s21, 1
      %p51 = por %p49, %p50
      %p52 = scmp.ne.s32.totalorder %s41, %s42
      %p53 = scmp.eq.s32.totalorder %s21, 0
      %p54 = por %p52, %p53
      %p55 = scmp.ne.s32.totalorder %s41, %s42
      %p56 = scmp.eq.s32.totalorder %s22, 1
      %p57 = por %p55, %p56
      %p59 = scmp.ne.s32.totalorder %s42, %s58
      %p60 = scmp.eq.s32.totalorder %s22, 0
      %p61 = por %p59, %p60
      %s62 = ssub.s32 %s24, %s31
      %p63 = scmp.eq.s32.totalorder %s62, 0
      %s65 = sadd.s32 %s64, 1
      %s66 = scalar_select %p63, %s64, %s65
      %p69 = pneg %p63
      %p70 = scmp.eq.s32.totalorder %s16, 1
      %p71 = por %p69, %p70
      %p72 = scmp.ne.s32.totalorder %s64, %s67
      %p73 = scmp.eq.s32.totalorder %s16, 0
      %p74 = por %p72, %p73
      %p75 = scmp.ne.s32.totalorder %s64, %s67
      %p76 = scmp.eq.s32.totalorder %s21, 1
      %p77 = por %p75, %p76
      %p78 = scmp.ne.s32.totalorder %s67, %s68
      %p79 = scmp.eq.s32.totalorder %s21, 0
      %p80 = por %p78, %p79
      %p81 = scmp.ne.s32.totalorder %s67, %s68
      %p82 = scmp.eq.s32.totalorder %s22, 1
      %p83 = por %p81, %p82
      %p85 = scmp.ne.s32.totalorder %s68, %s84
      %p86 = scmp.eq.s32.totalorder %s22, 0
      %p87 = por %p85, %p86
      %s88 = ssub.s32 %s24, %s31
      %p89 = scmp.eq.s32.totalorder %s88, 0
      %s91 = sadd.s32 %s90, 1
      %s92 = scalar_select %p89, %s90, %s91
      %p95 = pneg %p89
      %p96 = scmp.eq.s32.totalorder %s16, 1
      %p97 = por %p95, %p96
      %p98 = scmp.ne.s32.totalorder %s90, %s93
      %p99 = scmp.eq.s32.totalorder %s16, 0
      %p100 = por %p98, %p99
      %p101 = scmp.ne.s32.totalorder %s90, %s93
      %p102 = scmp.eq.s32.totalorder %s21, 1
      %p103 = por %p101, %p102
      %p104 = scmp.ne.s32.totalorder %s93, %s94
      %p105 = scmp.eq.s32.totalorder %s21, 0
      %p106 = por %p104, %p105
      %p107 = scmp.ne.s32.totalorder %s93, %s94
      %p108 = scmp.eq.s32.totalorder %s22, 1
      %p109 = por %p107, %p108
      %p111 = scmp.ne.s32.totalorder %s94, %s110
      %p112 = scmp.eq.s32.totalorder %s22, 0
      %p113 = por %p111, %p112
      %s114 = ssub.s32 %s23, %s35
      %s115 = ssub.s32 %s24, %s31
      %s116 = sor.u32 %s114, %s115
      %p117 = scmp.eq.s32.totalorder %s116, 0
      %s119 = sadd.s32 %s118, 1
      %s120 = scalar_select %p117, %s118, %s119
      %p123 = pneg %p117
      %p124 = scmp.eq.s32.totalorder %s16, 1
      %p125 = por %p123, %p124
      %p126 = scmp.ne.s32.totalorder %s118, %s121
      %p127 = scmp.eq.s32.totalorder %s16, 0
      %p128 = por %p126, %p127
      %p129 = scmp.ne.s32.totalorder %s118, %s121
      %p130 = scmp.eq.s32.totalorder %s21, 1
      %p131 = por %p129, %p130
      %p132 = scmp.ne.s32.totalorder %s121, %s122
      %p133 = scmp.eq.s32.totalorder %s21, 0
      %p134 = por %p132, %p133
      %p135 = scmp.ne.s32.totalorder %s121, %s122
      %p136 = scmp.eq.s32.totalorder %s22, 1
      %p137 = por %p135, %p136
      %p139 = scmp.ne.s32.totalorder %s122, %s138
      %p140 = scmp.eq.s32.totalorder %s22, 0
      %p141 = por %p139, %p140
      %p142 = scmp.le.s32.totalorder 1, %s16
      %p143 = scmp.lt.s32.totalorder %s16, 3
      %p144 = pnand %p142, %p143
      %p145 = pneg %p144
      // Predicated region
      $region9: #{tpu_custom_call.1} parent=5 // pred_check
        _
      $region10: #{tpu_custom_call.1} parent=5 // pred_check_branch
        %147 = sbr.rel (%p144) target = $region12
      $region11: #{tpu_custom_call.1} parent=5 // pred_region
        %s148 = ssub.s32 %s16, 1
        // Predicated region
        $region13: #{tpu_custom_call.1} parent=11 // pred_check
          %p149 = pneg %p80
        $region14: #{tpu_custom_call.1} parent=11 // pred_check_branch
          %151 = sbr.rel (%p149) target = $region16
        $region15: #{tpu_custom_call.1} parent=11 // pred_region
          %s153 = ssub.s32 2048, 2048
          %154 = vsyncadd [#allocation6], %s153
          %s155 = smul.addr %s26, 64
          %s156 = scalar_lea.hbm %s1, %s155
          %s157 = sshll.u32 [#allocation5], 4
          %s158 = int_to_ptr.vmem [resolvable:$true] %s157
          %163 = dma.hbm_to_vmem [thread:$0]  %s156, 2048, %s158, [#allocation6], 64, 64, 4
        $region16: #{tpu_custom_call.1} parent=11 // pred_fallthru
          _
        // Predicated region
        $region17: #{tpu_custom_call.1} parent=11 // pred_check
          %p164 = pneg %p106
        $region18: #{tpu_custom_call.1} parent=11 // pred_check_branch
          %166 = sbr.rel (%p164) target = $region20
        $region19: #{tpu_custom_call.1} parent=11 // pred_region
          %p167 = scmp.lt.s32.totalorder %s26, 0
          %s168 = scalar_select %p167, %s26, 0
          %s169 = scalar_lea.vmem %s2, %s168
        $region20: #{tpu_custom_call.1} parent=11 // pred_fallthru
          _
      $region12: #{tpu_custom_call.1} parent=5 // pred_fallthru
        _
      %p170 = scmp.lt.s32.totalorder %s16, 2
      // Predicated region
      $region21: #{tpu_custom_call.1} parent=5 // pred_check
        %p171 = pneg %p170
      $region22: #{tpu_custom_call.1} parent=5 // pred_check_branch
        %173 = sbr.rel (%p171) target = $region24
      $region23: #{tpu_custom_call.1} parent=5 // pred_region
        // Predicated region
        $region25: #{tpu_custom_call.1} parent=23 // pred_check
          %p174 = pneg %p48
        $region26: #{tpu_custom_call.1} parent=23 // pred_check_branch
          %176 = sbr.rel (%p174) target = $region28
        $region27: #{tpu_custom_call.1} parent=23 // pred_region
          %s177 = sand.u32 %s38, 1
          %s178 = scalar_lea.sflag [#allocation3], %s177
          %s179 = sand.u32 %s38, 1
          %s180 = smul.addr %s179, 64
          %s181 = scalar_lea.vmem [#allocation2], %s180
          %s182 = smul.u32 8, %s23
          %s184 = ssub.s32 1024, 1024
          %185 = vsyncadd %s178, %s184
          %s186 = smul.addr %s182, 2
          %s187 = smul.addr %s186, 64
          %s188 = scalar_lea.hbm %s0, %s187
          %s189 = sshll.u32 %s181, 4
          %s190 = int_to_ptr.vmem [resolvable:$true] %s189
          %195 = dma.hbm_to_vmem [thread:$0]  %s188, 1024, %s190, %s178, 128, 128, 8
        $region28: #{tpu_custom_call.1} parent=23 // pred_fallthru
          _
      $region24: #{tpu_custom_call.1} parent=5 // pred_fallthru
        _
      %p196 = scmp.le.s32.totalorder 1, %s16
      %p197 = scmp.lt.s32.totalorder %s16, 3
      %p198 = pnand %p196, %p197
      %p199 = pneg %p198
      // Predicated region
      $region29: #{tpu_custom_call.1} parent=5 // pred_check
        _
      $region30: #{tpu_custom_call.1} parent=5 // pred_check_branch
        %201 = sbr.rel (%p198) target = $region32
      $region31: #{tpu_custom_call.1} parent=5 // pred_region
        %s202 = ssub.s32 %s16, 1
        %s203 = sand.u32 %s41, 1
        %s204 = scalar_lea.sflag [#allocation3], %s203
        %s205 = sand.u32 %s41, 1
        %s206 = smul.addr %s205, 64
        %s207 = scalar_lea.vmem [#allocation2], %s206
        // Predicated region
        $region33: #{tpu_custom_call.1} parent=31 // pred_check
          %p208 = pneg %p54
        $region34: #{tpu_custom_call.1} parent=31 // pred_check_branch
          %210 = sbr.rel (%p208) target = $region36
        $region35: #{tpu_custom_call.1} parent=31 // pred_region
          %211 = dma.done %s204, 1024
        $region36: #{tpu_custom_call.1} parent=31 // pred_fallthru
          _
        // Predicated region
        $region37: #{tpu_custom_call.1} parent=31 // pred_check
          %p212 = pneg %p80
        $region38: #{tpu_custom_call.1} parent=31 // pred_check_branch
          %214 = sbr.rel (%p212) target = $region40
        $region39: #{tpu_custom_call.1} parent=31 // pred_region
          %215 = dma.done [#allocation6], 2048
        $region40: #{tpu_custom_call.1} parent=31 // pred_fallthru
          _
        %s216 = sand.u32 %s41, 1
        %s217 = scalar_lea.sflag [#allocation3], %s216
        %s218 = sand.u32 %s41, 1
        %s219 = smul.addr %s218, 64
        %s220 = scalar_lea.vmem [#allocation2], %s219
        %p221 = pneg %p54
        %p222 = pneg %p51
        %p223 = pneg %p80
        %p224 = pneg %p77
        %p225 = scmp.lt.s32.totalorder %s26, 0
        %s226 = scalar_select %p225, %s26, 0
        %s227 = scalar_lea.vmem %s2, %s226
        %p228 = pneg %p106
        %p229 = pneg %p103
        %p230 = pneg %p134
        %p231 = pneg %p131
        %s232 = sand.u32 %s121, 1
        %s233 = scalar_lea.sflag [#allocation4], %s232
        %s234 = sand.u32 %s121, 1
        %s235 = smul.addr %s234, 32
        %s236 = scalar_lea.vmem [#allocation7], %s235
        %s237 = smul.u32 8, %s25
        %p238 = scmp.lt.s32.totalorder %s26, 0
        %s239 = scalar_select %p238, %s26, 0
        %s240 = scalar_lea.vmem %s2, %s239
        %s241 = smul.u32 8, %s25
        %v243 = vld [vmem:[%s207] sm:$0xff]
        %v244 = vld [vmem:[%s207 + $0x8] sm:$0xff]
        %v245 = vld [vmem:[%s207 + $0x10] sm:$0xff]
        %v246 = vld [vmem:[%s207 + $0x18] sm:$0xff]
        %v247 = vld [vmem:[%s207 + $0x20] sm:$0xff]
        %v248 = vld [vmem:[%s207 + $0x28] sm:$0xff]
        %v249 = vld [vmem:[%s207 + $0x30] sm:$0xff]
        %v250 = vld [vmem:[%s207 + $0x38] sm:$0xff]
        %v251 = vld [vmem:[#allocation5] sm:$0xf]
        %v252 = vld [vmem:[#allocation5 + $0x4] sm:$0xf]
        %v253 = vld [vmem:[#allocation5 + $0x8] sm:$0xf]
        %v254 = vld [vmem:[#allocation5 + $0xc] sm:$0xf]
        %v255 = vld [vmem:[#allocation5 + $0x10] sm:$0xf]
        %v256 = vld [vmem:[#allocation5 + $0x14] sm:$0xf]
        %v257 = vld [vmem:[#allocation5 + $0x18] sm:$0xf]
        %v258 = vld [vmem:[#allocation5 + $0x1c] sm:$0xf]
        %v259 = vld [vmem:[#allocation5 + $0x20] sm:$0xf]
        %v260 = vld [vmem:[#allocation5 + $0x24] sm:$0xf]
        %v261 = vld [vmem:[#allocation5 + $0x28] sm:$0xf]
        %v262 = vld [vmem:[#allocation5 + $0x2c] sm:$0xf]
        %v263 = vld [vmem:[#allocation5 + $0x30] sm:$0xf]
        %v264 = vld [vmem:[#allocation5 + $0x34] sm:$0xf]
        %v265 = vld [vmem:[#allocation5 + $0x38] sm:$0xf]
        %v266 = vld [vmem:[#allocation5 + $0x3c] sm:$0xf]
        %v267 = vld [vmem:[#allocation5 + $0x40] sm:$0xf]
        %v268 = vld [vmem:[#allocation5 + $0x44] sm:$0xf]
        %v269 = vld [vmem:[#allocation5 + $0x48] sm:$0xf]
        %v270 = vld [vmem:[#allocation5 + $0x4c] sm:$0xf]
        %v271 = vld [vmem:[#allocation5 + $0x50] sm:$0xf]
        %v272 = vld [vmem:[#allocation5 + $0x54] sm:$0xf]
        %v273 = vld [vmem:[#allocation5 + $0x58] sm:$0xf]
        %v274 = vld [vmem:[#allocation5 + $0x5c] sm:$0xf]
        %v275 = vld [vmem:[#allocation5 + $0x60] sm:$0xf]
        %v276 = vld [vmem:[#allocation5 + $0x64] sm:$0xf]
        %v277 = vld [vmem:[#allocation5 + $0x68] sm:$0xf]
        %v278 = vld [vmem:[#allocation5 + $0x6c] sm:$0xf]
        %v279 = vld [vmem:[#allocation5 + $0x70] sm:$0xf]
        %v280 = vld [vmem:[#allocation5 + $0x74] sm:$0xf]
        %v281 = vld [vmem:[#allocation5 + $0x78] sm:$0xf]
        %v282 = vld [vmem:[#allocation5 + $0x7c] sm:$0xf]
        %v283 = vld [vmem:[%s240] sm:$0x1]
        %v285 = vlaneseq
        %v286 = vshrl.u32 %v285, 7
        %v287 = vsub.s32 0, %v286
        %v288 = vrot.slane %v283, %v287
        %v298 = vunpack.c.l.b16 %v243
        %v299 = vunpack.c.h.b16 %v243
        %v300 = vunpack.c.l.b16 %v244
        %v301 = vunpack.c.h.b16 %v244
        %v302 = vunpack.c.l.b16 %v245
        %v303 = vunpack.c.h.b16 %v245
        %v304 = vunpack.c.l.b16 %v246
        %v305 = vunpack.c.h.b16 %v246
        %v306 = vunpack.c.l.b16 %v247
        %v307 = vunpack.c.h.b16 %v247
        %v308 = vunpack.c.l.b16 %v248
        %v309 = vunpack.c.h.b16 %v248
        %v310 = vunpack.c.l.b16 %v249
        %v311 = vunpack.c.h.b16 %v249
        %v312 = vunpack.c.l.b16 %v250
        %v313 = vunpack.c.h.b16 %v250
        %v314 = vpack.c.b16 %v300, %v298
        %v315 = vpack.c.b16 %v301, %v299
        %v316 = vpack.c.b16 %v304, %v302
        %v317 = vpack.c.b16 %v305, %v303
        %v318 = vpack.c.b16 %v308, %v306
        %v319 = vpack.c.b16 %v309, %v307
        %v320 = vpack.c.b16 %v312, %v310
        %v321 = vpack.c.b16 %v313, %v311
        %v362 = vunpack.c.l.b16 %v251
        %v363 = vunpack.c.l.b16 %v252
        %v364 = vunpack.c.l.b16 %v253
        %v365 = vunpack.c.l.b16 %v254
        %v366 = vunpack.c.l.b16 %v255
        %v367 = vunpack.c.l.b16 %v256
        %v368 = vunpack.c.l.b16 %v257
        %v369 = vunpack.c.l.b16 %v258
        %v370 = vunpack.c.l.b16 %v259
        %v371 = vunpack.c.l.b16 %v260
        %v372 = vunpack.c.l.b16 %v261
        %v373 = vunpack.c.l.b16 %v262
        %v374 = vunpack.c.l.b16 %v263
        %v375 = vunpack.c.l.b16 %v264
        %v376 = vunpack.c.l.b16 %v265
        %v377 = vunpack.c.l.b16 %v266
        %v378 = vunpack.c.l.b16 %v267
        %v379 = vunpack.c.l.b16 %v268
        %v380 = vunpack.c.l.b16 %v269
        %v381 = vunpack.c.l.b16 %v270
        %v382 = vunpack.c.l.b16 %v271
        %v383 = vunpack.c.l.b16 %v272
        %v384 = vunpack.c.l.b16 %v273
        %v385 = vunpack.c.l.b16 %v274
        %v386 = vunpack.c.l.b16 %v275
        %v387 = vunpack.c.l.b16 %v276
        %v388 = vunpack.c.l.b16 %v277
        %v389 = vunpack.c.l.b16 %v278
        %v390 = vunpack.c.l.b16 %v279
        %v391 = vunpack.c.l.b16 %v280
        %v392 = vunpack.c.l.b16 %v281
        %v393 = vunpack.c.l.b16 %v282
        %v394 = vpack.c.b16 %v363, %v362
        %v395 = vpack.c.b16 %v365, %v364
        %v396 = vpack.c.b16 %v367, %v366
        %v397 = vpack.c.b16 %v369, %v368
        %v398 = vpack.c.b16 %v371, %v370
        %v399 = vpack.c.b16 %v373, %v372
        %v400 = vpack.c.b16 %v375, %v374
        %v401 = vpack.c.b16 %v377, %v376
        %v402 = vpack.c.b16 %v379, %v378
        %v403 = vpack.c.b16 %v381, %v380
        %v404 = vpack.c.b16 %v383, %v382
        %v405 = vpack.c.b16 %v385, %v384
        %v406 = vpack.c.b16 %v387, %v386
        %v407 = vpack.c.b16 %v389, %v388
        %v408 = vpack.c.b16 %v391, %v390
        %v409 = vpack.c.b16 %v393, %v392
        %426 = vmatprep.subr.bf16.mxu0 0
        %427 = vmatpush1.bf16.msra.mxu0 %v394
        %428 = vmatprep.subr.bf16.mxu0 0
        %429 = vmatpush1.bf16.msra.mxu0 %v395
        %430 = vmatprep.subr.bf16.mxu0 0
        %431 = vmatpush1.bf16.msra.mxu0 %v396
        %432 = vmatprep.subr.bf16.mxu0 0
        %433 = vmatpush1.bf16.msra.mxu0 %v397
        %434 = vmatprep.subr.bf16.mxu0 0
        %435 = vmatpush1.bf16.msra.mxu0 %v398
        %436 = vmatprep.subr.bf16.mxu0 0
        %437 = vmatpush1.bf16.msra.mxu0 %v399
        %438 = vmatprep.subr.bf16.mxu0 0
        %439 = vmatpush1.bf16.msra.mxu0 %v400
        %440 = vmatprep.subr.bf16.mxu0 0
        %441 = vmatpush1.bf16.msra.mxu0 %v401
        %442 = vmatprep.subr.bf16.mxu0 0
        %443 = vmatpush1.bf16.msra.mxu0 %v402
        %444 = vmatprep.subr.bf16.mxu0 0
        %445 = vmatpush1.bf16.msra.mxu0 %v403
        %446 = vmatprep.subr.bf16.mxu0 0
        %447 = vmatpush1.bf16.msra.mxu0 %v404
        %448 = vmatprep.subr.bf16.mxu0 0
        %449 = vmatpush1.bf16.msra.mxu0 %v405
        %450 = vmatprep.subr.bf16.mxu0 0
        %451 = vmatpush1.bf16.msra.mxu0 %v406
        %452 = vmatprep.subr.bf16.mxu0 0
        %453 = vmatpush1.bf16.msra.mxu0 %v407
        %454 = vmatprep.subr.bf16.mxu0 0
        %455 = vmatpush1.bf16.msra.mxu0 %v408
        %456 = vmatprep.subr.bf16.mxu0 0
        %457 = vmatpush1.bf16.msra.mxu0 %v409
        %458 = vmatprep.mubr.bf16.mxu0 %v315
        %459 = vmatmul.mubr.bf16.gmra.mrb[0].mxu0 %v314
        %v460 = vpop.f32.mrb[0].mxu0
        %v461 = vadd.f32 %v288, %v460
        %v462 = vpop.f32.mrb[0].mxu0
        %v463 = vpop.f32.mrb[0].mxu0
        %v464 = vadd.f32 %v288, %v463
        %v465 = vpop.f32.mrb[0].mxu0
        %466 = vmatprep.mubr.bf16.mxu0 %v317
        %467 = vmatmul.mubr.bf16.gmra.mrb[0].mxu0 %v316
        %v468 = vpop.f32.mrb[0].mxu0
        %v469 = vadd.f32 %v288, %v468
        %v470 = vpop.f32.mrb[0].mxu0
        %v471 = vpop.f32.mrb[0].mxu0
        %v472 = vadd.f32 %v288, %v471
        %v473 = vpop.f32.mrb[0].mxu0
        %474 = vmatprep.mubr.bf16.mxu0 %v319
        %475 = vmatmul.mubr.bf16.gmra.mrb[0].mxu0 %v318
        %v476 = vpop.f32.mrb[0].mxu0
        %v477 = vadd.f32 %v288, %v476
        %v478 = vpop.f32.mrb[0].mxu0
        %v479 = vpop.f32.mrb[0].mxu0
        %v480 = vadd.f32 %v288, %v479
        %v481 = vpop.f32.mrb[0].mxu0
        %482 = vmatprep.mubr.bf16.mxu0 %v321
        %483 = vmatmul.mubr.bf16.gmra.mrb[0].mxu0 %v320
        %v484 = vpop.f32.mrb[0].mxu0
        %v485 = vadd.f32 %v288, %v484
        %v486 = vpop.f32.mrb[0].mxu0
        %v487 = vpop.f32.mrb[0].mxu0
        %v488 = vadd.f32 %v288, %v487
        %v489 = vpop.f32.mrb[0].mxu0
        %490 = vdwg.mxu0
        %v491 = vmax.f32 %v461, 0.0
        %v492 = vmax.f32 %v464, 0.0
        %v493 = vmax.f32 %v469, 0.0
        %v494 = vmax.f32 %v472, 0.0
        %v495 = vmax.f32 %v477, 0.0
        %v496 = vmax.f32 %v480, 0.0
        %v497 = vmax.f32 %v485, 0.0
        %v498 = vmax.f32 %v488, 0.0
        %v499 = vpack.c.bf16 %v492, %v491
        %v500 = vpack.c.bf16 %v494, %v493
        %v501 = vpack.c.bf16 %v496, %v495
        %v502 = vpack.c.bf16 %v498, %v497
        %v507 = vunpack.c.l.b16 %v499
        %v508 = vunpack.c.h.b16 %v499
        %v509 = vunpack.c.l.b16 %v500
        %v510 = vunpack.c.h.b16 %v500
        %v511 = vunpack.c.l.b16 %v501
        %v512 = vunpack.c.h.b16 %v501
        %v513 = vunpack.c.l.b16 %v502
        %v514 = vunpack.c.h.b16 %v502
        %v515 = vpack.c.b16 %v507, %v507
        %v516 = vpack.c.b16 %v508, %v508
        %v517 = vpack.c.b16 %v509, %v509
        %v518 = vpack.c.b16 %v510, %v510
        %v519 = vpack.c.b16 %v511, %v511
        %v520 = vpack.c.b16 %v512, %v512
        %v521 = vpack.c.b16 %v513, %v513
        %v522 = vpack.c.b16 %v514, %v514
        %531 = vst [vmem:[%s236] sm:$0xf] %v515
        %532 = vst [vmem:[%s236 + $0x4] sm:$0xf] %v516
        %533 = vst [vmem:[%s236 + $0x8] sm:$0xf] %v517
        %534 = vst [vmem:[%s236 + $0xc] sm:$0xf] %v518
        %535 = vst [vmem:[%s236 + $0x10] sm:$0xf] %v519
        %536 = vst [vmem:[%s236 + $0x14] sm:$0xf] %v520
        %537 = vst [vmem:[%s236 + $0x18] sm:$0xf] %v521
        %538 = vst [vmem:[%s236 + $0x1c] sm:$0xf] %v522
        %s539 = sand.u32 %s121, 1
        %s540 = scalar_lea.sflag [#allocation4], %s539
        %s541 = sand.u32 %s121, 1
        %s542 = smul.addr %s541, 32
        %s543 = scalar_lea.vmem [#allocation7], %s542
        // Predicated region
        $region41: #{tpu_custom_call.1} parent=31 // pred_check
          %p544 = pneg %p131
        $region42: #{tpu_custom_call.1} parent=31 // pred_check_branch
          %546 = sbr.rel (%p544) target = $region44
        $region43: #{tpu_custom_call.1} parent=31 // pred_region
          %s547 = smul.u32 8, %s25
          %s549 = ssub.s32 512, 512
          %550 = vsyncadd %s540, %s549
          %s551 = sadd.s32 %s26, %s547
          %s552 = smul.addr %s551, 64
          %s553 = scalar_lea.hbm %s3, %s552
          %s554 = sshll.u32 %s543, 4
          %s555 = int_to_ptr.vmem [resolvable:$true] %s554
          %560 = dma.vmem_to_hbm [thread:$0]  %s555, 512, %s553, %s540, 64, 64, 4
        $region44: #{tpu_custom_call.1} parent=31 // pred_fallthru
          _
      $region32: #{tpu_custom_call.1} parent=5 // pred_fallthru
        _
      %p561 = scmp.le.s32.totalorder 2, %s16
      // Predicated region
      $region45: #{tpu_custom_call.1} parent=5 // pred_check
        %p562 = pneg %p561
      $region46: #{tpu_custom_call.1} parent=5 // pred_check_branch
        %564 = sbr.rel (%p562) target = $region48
      $region47: #{tpu_custom_call.1} parent=5 // pred_region
        %s565 = ssub.s32 %s16, 2
        // Predicated region
        $region49: #{tpu_custom_call.1} parent=47 // pred_check
          %p566 = pneg %p137
        $region50: #{tpu_custom_call.1} parent=47 // pred_check_branch
          %568 = sbr.rel (%p566) target = $region52
        $region51: #{tpu_custom_call.1} parent=47 // pred_region
          %s569 = sand.u32 %s122, 1
          %s570 = scalar_lea.sflag [#allocation4], %s569
          %s571 = sand.u32 %s122, 1
          %s572 = smul.addr %s571, 32
          %s573 = scalar_lea.vmem [#allocation7], %s572
          %574 = dma.done %s570, 512
        $region52: #{tpu_custom_call.1} parent=47 // pred_fallthru
          _
      $region48: #{tpu_custom_call.1} parent=5 // pred_fallthru
        _
    $region6: #{tpu_custom_call.1} parent=1 // loop_footer
      %s20 = sadd.s32 1, %s16
    $region7: #{tpu_custom_call.1} parent=1 // loop_footer_branch
      %15 = sbr.rel target = $region3
    $region8: #{tpu_custom_call.1} parent=1 // loop_exit
      _
    %575 = vsyncpa [#allocation3], 1
    %s576 = scalar_lea.sflag [#allocation3], 1
    %577 = vsyncpa %s576, 1
    %578 = vsyncpa [#allocation6], 1
    %579 = vsyncpa [#allocation4], 1
    %s580 = scalar_lea.sflag [#allocation4], 1
    %581 = vsyncpa %s580, 1

</llo_original>
